<compile_context>
chip_gen: v7x
topology: tpu7x:2x2x1
jax: 0.10.0
libtpu: 0.0.40
codegen_flags: <defaults>
</compile_context>

<pallas_src>
import jax
import jax.numpy as jnp
from jax import lax
from jax.experimental import pallas as pl
from jax.experimental.pallas import tpu as pltpu


def attack_net_kernel(x_ref, w1_ref, b1_ref, w2_ref, b2_ref,
                      w4_ref, b4_ref, w3_ref, b3_ref, o_ref):
    # fc1 + relu   (bf16 MXU operands, f32 accumulation)
    h = jnp.dot(x_ref[...].astype(jnp.bfloat16), w1_ref[...],
                preferred_element_type=jnp.float32)
    h = jnp.maximum(h + b1_ref[...], 0.0)
    # fc2 + relu
    h = jnp.dot(h.astype(jnp.bfloat16), w2_ref[...],
                preferred_element_type=jnp.float32)
    h = jnp.maximum(h + b2_ref[...], 0.0)
    # fc4 + relu
    h = jnp.dot(h.astype(jnp.bfloat16), w4_ref[...],
                preferred_element_type=jnp.float32)
    h = jnp.maximum(h + b4_ref[...], 0.0)
    # fc3 (K=32, N=1): contract the (1, 32) weight row against h's feature dim
    # so the result is produced directly as a lane-dense (1, tb) slab (batch on
    # the lane axis) -- no (tb, 1) column store and no extra transpose. Kept f32.
    z = lax.dot_general(w3_ref[...], h,
                        dimension_numbers=(((1,), (1,)), ((), ())),
                        preferred_element_type=jnp.float32) + b3_ref[...]
    # numerically stable sigmoid: clamp keeps exp finite; exp and the
    # approximate reciprocal both sit in the (otherwise idle) EUP slot.
    z = jnp.clip(z, -30.0, 30.0)
    o_ref[...] = pl.reciprocal(1.0 + jnp.exp(-z), approx=True).astype(o_ref.dtype)
    # TODO(synk): dropout layers are stochastic in train mode; implemented as
    # identity (eval-mode semantics).


def _round_up(n, m):
    return ((n + m - 1) // m) * m


def _cdiv(a, b):
    return (a + b - 1) // b


def _choose_batch_tile(B, tb_max):
    """Pick (tb, num_tiles): <8 rows of padding, >=2 (even) grid steps for v7x."""
    b8 = _round_up(max(B, 1), 8)
    num_tiles = _cdiv(b8, tb_max)
    if b8 >= 16:
        num_tiles = max(2, num_tiles)       # v7x: give both TensorCores work
    if num_tiles > 1 and num_tiles % 2:
        num_tiles += 1                      # v7x: even split across 2 cores
    tb = _round_up(_cdiv(b8, num_tiles), 8)
    return tb, num_tiles


def attack_net_forward(x, params, *, tb_max=2048):
    """x: (B, 20) float32 (bfloat16 also accepted). Returns (B, 1) float32."""
    B = x.shape[0]
    tb, num_tiles = _choose_batch_tile(B, tb_max)
    b_pad = tb * num_tiles
    if b_pad != B:
        x = jnp.pad(x, ((0, b_pad - B), (0, 0)))

    # Weights feeding the MXU stored as bf16 (no per-step weight cast in-kernel).
    w1 = params["w1"].astype(jnp.bfloat16)
    w2 = params["w2"].astype(jnp.bfloat16)
    w4 = params["w4"].astype(jnp.bfloat16)
    b1, b2, b4 = params["b1"], params["b2"], params["b4"]
    # Final layer kept f32; weight presented as a (1, 32) row.
    w3 = params["w3"].reshape(1, 32).astype(jnp.float32)
    b3 = params["b3"].reshape(1, 1).astype(jnp.float32)

    # Weights/biases: same block every grid step -> stay VMEM-resident.
    resident = lambda shape: pl.BlockSpec(shape, lambda i: (0, 0))

    # x is the only streamed operand; deepen its pipeline on long grids.
    if num_tiles >= 4:
        x_spec = pl.BlockSpec((tb, 20), lambda i: (i, 0),
                              pipeline_mode=pl.Buffered(3))
    else:
        x_spec = pl.BlockSpec((tb, 20), lambda i: (i, 0))

    out = pl.pallas_call(
        attack_net_kernel,
        # Lane-dense output: one (1, tb) slab per grid step.
        out_shape=jax.ShapeDtypeStruct((num_tiles, 1, tb), jnp.float32),
        grid_spec=pltpu.PrefetchScalarGridSpec(
            num_scalar_prefetch=0,
            grid=(num_tiles,),                               # stream the batch
            in_specs=[
                x_spec,
                resident(w1.shape), resident(b1.shape),
                resident(w2.shape), resident(b2.shape),
                resident(w4.shape), resident(b4.shape),
                resident(w3.shape), resident(b3.shape),
            ],
            out_specs=pl.BlockSpec((None, 1, tb), lambda i: (i, 0, 0)),
        ),
        compiler_params=pltpu.CompilerParams(
            dimension_semantics=("parallel",),    # batch tiles are independent
            vmem_limit_bytes=32 * 1024 * 1024),   # headroom for tb sweeps up to
                                                  # ~4096 (v5e default is 16 MiB)
    )(x, w1, b1, w2, b2, w4, b4, w3, b3)

    # (num_tiles, 1, tb) -> (b_pad,) in batch order -> (B, 1)
    return out.reshape(b_pad)[:B].reshape(B, 1)


def init_params(key):
    """Deterministic init mimicking nn.Linear default (U(-1/sqrt(fan_in), +))."""
    dims = {"1": (20, 256), "2": (256, 128), "4": (128, 32), "3": (32, 1)}
    params = {}
    for name, (fan_in, fan_out) in dims.items():
        key, kw, kb = jax.random.split(key, 3)
        bound = 1.0 / jnp.sqrt(fan_in)
        params[f"w{name}"] = jax.random.uniform(
            kw, (fan_in, fan_out), jnp.float32, -bound, bound)
        params[f"b{name}"] = jax.random.uniform(
            kb, (1, fan_out), jnp.float32, -bound, bound)
    return params


if __name__ == "__main__":
    key = jax.random.PRNGKey(0)
    key, kx = jax.random.split(key)
    B = 300  # exercises padding (<8 rows) and a 2-step "parallel" grid
    x = jax.random.normal(kx, (B, 20), jnp.float32)
    params = init_params(key)

    out = attack_net_forward(x, params)
    out = jax.block_until_ready(out)

    # Reference check in plain JAX (full f32, eval-mode dropout).
    def ref(x, p):
        h = jnp.maximum(x @ p["w1"] + p["b1"], 0.0)
        h = jnp.maximum(h @ p["w2"] + p["b2"], 0.0)
        h = jnp.maximum(h @ p["w4"] + p["b4"], 0.0)
        return jax.nn.sigmoid(h @ p["w3"] + p["b3"])

    expected = ref(x, params)
    assert out.shape == (B, 1)
    # Tolerance loosened for bf16 MXU operands (sigmoid output in [0, 1]).
    assert jnp.allclose(out, expected, atol=2e-2, rtol=2e-2)
    print("KERNEL_OK")
</pallas_src>

<mosaic_0001>
module attributes {stable_mosaic.version = 11 : i64} {
  func.func @attack_net_kernel(%arg0: i32, %arg1: memref<152x20xf32, #tpu.memory_space<vmem>>, %arg2: memref<20x256xbf16, #tpu.memory_space<vmem>>, %arg3: memref<1x256xf32, #tpu.memory_space<vmem>>, %arg4: memref<256x128xbf16, #tpu.memory_space<vmem>>, %arg5: memref<1x128xf32, #tpu.memory_space<vmem>>, %arg6: memref<128x32xbf16, #tpu.memory_space<vmem>>, %arg7: memref<1x32xf32, #tpu.memory_space<vmem>>, %arg8: memref<1x32xf32, #tpu.memory_space<vmem>>, %arg9: memref<1x1xf32, #tpu.memory_space<vmem>>, %arg10: memref<1x1x152xf32, #tpu.memory_space<vmem>>) attributes {dimension_semantics = [#tpu.dimension_semantics<parallel>], iteration_bounds = array<i64: 2>, scalar_prefetch = 0 : i64, scratch_operands = 0 : i64, tpu.core_type = #tpu.core_type<tc>, window_params = [{transform_indices = @transform_0, window_bounds = array<i64: 152, 20>}, {pipeline_mode = #tpu.pipeline_mode<synchronous>, transform_indices = @transform_1, window_bounds = array<i64: 20, 256>}, {pipeline_mode = #tpu.pipeline_mode<synchronous>, transform_indices = @transform_2, window_bounds = array<i64: 1, 256>}, {pipeline_mode = #tpu.pipeline_mode<synchronous>, transform_indices = @transform_3, window_bounds = array<i64: 256, 128>}, {pipeline_mode = #tpu.pipeline_mode<synchronous>, transform_indices = @transform_4, window_bounds = array<i64: 1, 128>}, {pipeline_mode = #tpu.pipeline_mode<synchronous>, transform_indices = @transform_5, window_bounds = array<i64: 128, 32>}, {pipeline_mode = #tpu.pipeline_mode<synchronous>, transform_indices = @transform_6, window_bounds = array<i64: 1, 32>}, {pipeline_mode = #tpu.pipeline_mode<synchronous>, transform_indices = @transform_7, window_bounds = array<i64: 1, 32>}, {pipeline_mode = #tpu.pipeline_mode<synchronous>, transform_indices = @transform_8, window_bounds = array<i64: 1, 1>}, {transform_indices = @transform_9, window_bounds = array<i64: 1, 1, 152>}]} {
    %c0 = arith.constant 0 : index
    %c0_0 = arith.constant 0 : index
    %0 = vector.load %arg1[%c0, %c0_0] : memref<152x20xf32, #tpu.memory_space<vmem>>, vector<152x20xf32>
    %1 = arith.truncf %0 : vector<152x20xf32> to vector<152x20xbf16>
    %c0_1 = arith.constant 0 : index
    %c0_2 = arith.constant 0 : index
    %2 = vector.load %arg2[%c0_1, %c0_2] : memref<20x256xbf16, #tpu.memory_space<vmem>>, vector<20x256xbf16>
    %cst = arith.constant dense<0.000000e+00> : vector<152x256xf32>
    %3 = tpu.matmul %1, %2, %cst {dimension_numbers = #tpu.dot_dimension_numbers<[1], [0], [0], [1], [0, 0, 1, 1], [], []>} : vector<152x20xbf16>, vector<20x256xbf16>, vector<152x256xf32> -> vector<152x256xf32>
    %c0_3 = arith.constant 0 : index
    %c0_4 = arith.constant 0 : index
    %4 = vector.load %arg3[%c0_3, %c0_4] : memref<1x256xf32, #tpu.memory_space<vmem>>, vector<1x256xf32>
    %5 = vector.broadcast %4 : vector<1x256xf32> to vector<152x256xf32>
    %6 = arith.addf %3, %5 : vector<152x256xf32>
    %cst_5 = arith.constant 0.000000e+00 : f32
    %7 = vector.broadcast %cst_5 : f32 to vector<152x256xf32>
    %8 = arith.maximumf %6, %7 : vector<152x256xf32>
    %9 = arith.truncf %8 : vector<152x256xf32> to vector<152x256xbf16>
    %c0_6 = arith.constant 0 : index
    %c0_7 = arith.constant 0 : index
    %10 = vector.load %arg4[%c0_6, %c0_7] : memref<256x128xbf16, #tpu.memory_space<vmem>>, vector<256x128xbf16>
    %cst_8 = arith.constant dense<0.000000e+00> : vector<152x128xf32>
    %11 = tpu.matmul %9, %10, %cst_8 {dimension_numbers = #tpu.dot_dimension_numbers<[1], [0], [0], [1], [0, 0, 1, 1], [], []>} : vector<152x256xbf16>, vector<256x128xbf16>, vector<152x128xf32> -> vector<152x128xf32>
    %c0_9 = arith.constant 0 : index
    %c0_10 = arith.constant 0 : index
    %12 = vector.load %arg5[%c0_9, %c0_10] : memref<1x128xf32, #tpu.memory_space<vmem>>, vector<1x128xf32>
    %13 = vector.broadcast %12 : vector<1x128xf32> to vector<152x128xf32>
    %14 = arith.addf %11, %13 : vector<152x128xf32>
    %cst_11 = arith.constant 0.000000e+00 : f32
    %15 = vector.broadcast %cst_11 : f32 to vector<152x128xf32>
    %16 = arith.maximumf %14, %15 : vector<152x128xf32>
    %17 = arith.truncf %16 : vector<152x128xf32> to vector<152x128xbf16>
    %c0_12 = arith.constant 0 : index
    %c0_13 = arith.constant 0 : index
    %18 = vector.load %arg6[%c0_12, %c0_13] : memref<128x32xbf16, #tpu.memory_space<vmem>>, vector<128x32xbf16>
    %cst_14 = arith.constant dense<0.000000e+00> : vector<152x32xf32>
    %19 = tpu.matmul %17, %18, %cst_14 {dimension_numbers = #tpu.dot_dimension_numbers<[1], [0], [0], [1], [0, 0, 1, 1], [], []>} : vector<152x128xbf16>, vector<128x32xbf16>, vector<152x32xf32> -> vector<152x32xf32>
    %c0_15 = arith.constant 0 : index
    %c0_16 = arith.constant 0 : index
    %20 = vector.load %arg7[%c0_15, %c0_16] : memref<1x32xf32, #tpu.memory_space<vmem>>, vector<1x32xf32>
    %21 = vector.broadcast %20 : vector<1x32xf32> to vector<152x32xf32>
    %22 = arith.addf %19, %21 : vector<152x32xf32>
    %cst_17 = arith.constant 0.000000e+00 : f32
    %23 = vector.broadcast %cst_17 : f32 to vector<152x32xf32>
    %24 = arith.maximumf %22, %23 : vector<152x32xf32>
    %c0_18 = arith.constant 0 : index
    %c0_19 = arith.constant 0 : index
    %25 = vector.load %arg8[%c0_18, %c0_19] : memref<1x32xf32, #tpu.memory_space<vmem>>, vector<1x32xf32>
    %cst_20 = arith.constant dense<0.000000e+00> : vector<1x152xf32>
    %26 = tpu.matmul %25, %24, %cst_20 {dimension_numbers = #tpu.dot_dimension_numbers<[1], [1], [0], [0], [0, 0, 1, 0], [], []>} : vector<1x32xf32>, vector<152x32xf32>, vector<1x152xf32> -> vector<1x152xf32>
    %c0_21 = arith.constant 0 : index
    %c0_22 = arith.constant 0 : index
    %27 = vector.load %arg9[%c0_21, %c0_22] : memref<1x1xf32, #tpu.memory_space<vmem>>, vector<1x1xf32>
    %28 = vector.broadcast %27 : vector<1x1xf32> to vector<1x152xf32>
    %29 = arith.addf %26, %28 : vector<1x152xf32>
    %cst_23 = arith.constant -3.000000e+01 : f32
    %cst_24 = arith.constant 3.000000e+01 : f32
    %30 = vector.broadcast %cst_23 : f32 to vector<1x152xf32>
    %31 = arith.maximumf %30, %29 : vector<1x152xf32>
    %32 = vector.broadcast %cst_24 : f32 to vector<1x152xf32>
    %33 = arith.minimumf %32, %31 : vector<1x152xf32>
    %cst_25 = arith.constant 0.000000e+00 : f32
    %34 = vector.broadcast %cst_25 : f32 to vector<1x152xf32>
    %35 = arith.subf %34, %33 : vector<1x152xf32>
    %36 = math.exp %35 : vector<1x152xf32>
    %cst_26 = arith.constant 1.000000e+00 : f32
    %37 = vector.broadcast %cst_26 : f32 to vector<1x152xf32>
    %38 = arith.addf %37, %36 : vector<1x152xf32>
    %39 = tpu.reciprocal %38 {approx = true} : vector<1x152xf32> -> vector<1x152xf32>
    %c0_27 = arith.constant 0 : index
    %c0_28 = arith.constant 0 : index
    %c0_29 = arith.constant 0 : index
    %40 = vector.load %arg10[%c0_27, %c0_28, %c0_29] : memref<1x1x152xf32, #tpu.memory_space<vmem>>, vector<1x1x152xf32>
    %41 = vector.shape_cast %40 : vector<1x1x152xf32> to vector<1x152xf32>
    %42 = vector.shape_cast %39 : vector<1x152xf32> to vector<1x1x152xf32>
    tpu.vector_store %arg10[%c0_27, %c0_28, %c0_29], %42 {strides = array<i32>} : memref<1x1x152xf32, #tpu.memory_space<vmem>>, vector<1x1x152xf32>,
    return
  }
  func.func @transform_0(%arg0: i32) -> (i32, i32) {
    %c0_i32 = arith.constant 0 : i32
    %c0_i32_0 = arith.constant 0 : i32
    return %arg0, %c0_i32 : i32, i32
  }
  func.func @transform_1(%arg0: i32) -> (i32, i32) {
    %c0_i32 = arith.constant 0 : i32
    %c0_i32_0 = arith.constant 0 : i32
    %c0_i32_1 = arith.constant 0 : i32
    return %c0_i32, %c0_i32_0 : i32, i32
  }
  func.func @transform_2(%arg0: i32) -> (i32, i32) {
    %c0_i32 = arith.constant 0 : i32
    %c0_i32_0 = arith.constant 0 : i32
    %c0_i32_1 = arith.constant 0 : i32
    return %c0_i32, %c0_i32_0 : i32, i32
  }
  func.func @transform_3(%arg0: i32) -> (i32, i32) {
    %c0_i32 = arith.constant 0 : i32
    %c0_i32_0 = arith.constant 0 : i32
    %c0_i32_1 = arith.constant 0 : i32
    return %c0_i32, %c0_i32_0 : i32, i32
  }
  func.func @transform_4(%arg0: i32) -> (i32, i32) {
    %c0_i32 = arith.constant 0 : i32
    %c0_i32_0 = arith.constant 0 : i32
    %c0_i32_1 = arith.constant 0 : i32
    return %c0_i32, %c0_i32_0 : i32, i32
  }
  func.func @transform_5(%arg0: i32) -> (i32, i32) {
    %c0_i32 = arith.constant 0 : i32
    %c0_i32_0 = arith.constant 0 : i32
    %c0_i32_1 = arith.constant 0 : i32
    return %c0_i32, %c0_i32_0 : i32, i32
  }
  func.func @transform_6(%arg0: i32) -> (i32, i32) {
    %c0_i32 = arith.constant 0 : i32
    %c0_i32_0 = arith.constant 0 : i32
    %c0_i32_1 = arith.constant 0 : i32
    return %c0_i32, %c0_i32_0 : i32, i32
  }
  func.func @transform_7(%arg0: i32) -> (i32, i32) {
    %c0_i32 = arith.constant 0 : i32
    %c0_i32_0 = arith.constant 0 : i32
    %c0_i32_1 = arith.constant 0 : i32
    return %c0_i32, %c0_i32_0 : i32, i32
  }
  func.func @transform_8(%arg0: i32) -> (i32, i32) {
    %c0_i32 = arith.constant 0 : i32
    %c0_i32_0 = arith.constant 0 : i32
    %c0_i32_1 = arith.constant 0 : i32
    return %c0_i32, %c0_i32_0 : i32, i32
  }
  func.func @transform_9(%arg0: i32) -> (i32, i32, i32) {
    %c0_i32 = arith.constant 0 : i32
    %c0_i32_0 = arith.constant 0 : i32
    %c0_i32_1 = arith.constant 0 : i32
    return %arg0, %c0_i32, %c0_i32_0 : i32, i32, i32
  }
}

</mosaic_0001>

<llo_original>
// kernel: tpu_custom_call.1
$region0: #{tpu_custom_call.1}
  #allocation0 [shape = 'u32[]', space=smem, size = 0x4, offset = 0x4, fixed_abs, tag = 'smem constant byte address 0x4 - core index']
  #allocation1 [shape = 'u32[144,128]{1,0:T(1,128)}', space=vmem, size = 0x12000, scoped, tag = 'internal scratch']
  #allocation2 [shape = 'f32[1,1]{1,0:T(1,128)S(1)}', space=vmem, size = 0x200, scoped, tag = 'scoped memory for tpu_custom_call.1']
  %s0 = inlined_call_operand.vmem [shape: f32[304,20], index: 0, kind: input, shape index: {}]
  %s1 = inlined_call_operand.vmem [shape: bf16[20,256], index: 1, kind: input, shape index: {}]
  %s2 = inlined_call_operand.vmem [shape: f32[1,256], index: 2, kind: input, shape index: {}]
  %s3 = inlined_call_operand.vmem [shape: bf16[256,128], index: 3, kind: input, shape index: {}]
  %s4 = inlined_call_operand.vmem [shape: f32[1,128], index: 4, kind: input, shape index: {}]
  %s5 = inlined_call_operand.vmem [shape: bf16[128,32], index: 5, kind: input, shape index: {}]
  %s6 = inlined_call_operand.vmem [shape: f32[1,32], index: 6, kind: input, shape index: {}]
  %s7 = inlined_call_operand.vmem [shape: f32[1,32], index: 7, kind: input, shape index: {}]
  %s8 = inlined_call_operand.<no memory space> [shape: f32[1,1], index: 8, kind: input, shape index: {}]
  %s9 = inlined_call_operand.hbm [shape: f32[2,1,152], index: 9, kind: output, shape index: {}]
  %s10 = sld [smem:[#allocation0]]
  $region69: #{tpu_custom_call.1} parent=0
    _
  %s12 = ssub.s32 1, %s10
  %s13 = scalar_select 0, %s12, %s10
  %v14 = vstv %s8
  %15 = vst [vmem:[#allocation2] sm:$0x1] %v14
  $region1: #{tpu_custom_call.1} parent=0
    #allocation3 [shape = 'u8[2048]{0}', space=vmem, size = 0x800, scoped, tag = 'output window, operand 0']
    #allocation4 [shape = 's32[2]{0}', space=sflag, size = 0x8, scoped, tag = 'scoped memory for tpu_custom_call.1']
    %16 = vsyncpa [#allocation4], 0
    %s17 = scalar_lea.sflag [#allocation4], 1
    %18 = vsyncpa %s17, 0
    loop: start=0, step=1, limit=4
    $region2: #{tpu_custom_call.1} parent=1 // loop_pre_header
      _
    $region3: #{tpu_custom_call.1} parent=1 // loop_header
      %s20 = sphi 0, %s24
      %p21 = scmp.ge.s32.totalorder %s20, 4
      %s30 = sphi 0, %s32
      %s33 = sphi 0, %s30
      %s34 = sphi 0, %s33
      %s50 = sphi 0, %s34
      %s54 = sphi 0, %s54
      %s56 = sphi 0, %s54
      %s57 = sphi 0, %s56
      %s71 = sphi 0, %s57
      %s75 = sphi 0, %s75
      %s77 = sphi 0, %s75
      %s78 = sphi 0, %s77
      %s92 = sphi 0, %s78
      %s96 = sphi 0, %s96
      %s98 = sphi 0, %s96
      %s99 = sphi 0, %s98
      %s113 = sphi 0, %s99
      %s117 = sphi 0, %s117
      %s119 = sphi 0, %s117
      %s120 = sphi 0, %s119
      %s134 = sphi 0, %s120
      %s138 = sphi 0, %s138
      %s140 = sphi 0, %s138
      %s141 = sphi 0, %s140
      %s155 = sphi 0, %s141
      %s159 = sphi 0, %s159
      %s161 = sphi 0, %s159
      %s162 = sphi 0, %s161
      %s176 = sphi 0, %s162
      %s180 = sphi 0, %s180
      %s182 = sphi 0, %s180
      %s183 = sphi 0, %s182
      %s197 = sphi 0, %s183
      %s201 = sphi 0, %s201
      %s203 = sphi 0, %s201
      %s204 = sphi 0, %s203
      %s218 = sphi 0, %s204
      %s224 = sphi 0, %s226
      %s227 = sphi 0, %s224
      %s228 = sphi 0, %s227
      %s244 = sphi 0, %s228
    $region4: #{tpu_custom_call.1} parent=1 // loop_header_branch
      %23 = sbr.rel (%p21) target = $region8
    $region5: #{tpu_custom_call.1} parent=1 // loop_body
      %s25 = ssub.s32 %s20, 1
      %s26 = ssub.s32 %s20, 2
      %s27 = sadd.s32 %s20, 1
      %s28 = ssub.s32 %s20, %s27
      %p29 = scmp.eq.s32.totalorder %s28, 0
      %s31 = sadd.s32 %s30, 1
      %s32 = scalar_select %p29, %s30, %s31
      %p35 = pneg %p29
      %p36 = scmp.eq.s32.totalorder %s20, 1
      %p37 = por %p35, %p36
      %p38 = scmp.ne.s32.totalorder %s30, %s33
      %p39 = scmp.eq.s32.totalorder %s20, 0
      %p40 = por %p38, %p39
      %p41 = scmp.ne.s32.totalorder %s30, %s33
      %p42 = scmp.eq.s32.totalorder %s25, 1
      %p43 = por %p41, %p42
      %p44 = scmp.ne.s32.totalorder %s33, %s34
      %p45 = scmp.eq.s32.totalorder %s25, 0
      %p46 = por %p44, %p45
      %p47 = scmp.ne.s32.totalorder %s33, %s34
      %p48 = scmp.eq.s32.totalorder %s26, 1
      %p49 = por %p47, %p48
      %p51 = scmp.ne.s32.totalorder %s34, %s50
      %p52 = scmp.eq.s32.totalorder %s26, 0
      %p53 = por %p51, %p52
      %s55 = sadd.s32 %s54, 1
      %p58 = scmp.eq.s32.totalorder %s20, 1
      %p59 = scmp.ne.s32.totalorder %s54, %s56
      %p60 = scmp.eq.s32.totalorder %s20, 0
      %p61 = por %p59, %p60
      %p62 = scmp.ne.s32.totalorder %s54, %s56
      %p63 = scmp.eq.s32.totalorder %s25, 1
      %p64 = por %p62, %p63
      %p65 = scmp.ne.s32.totalorder %s56, %s57
      %p66 = scmp.eq.s32.totalorder %s25, 0
      %p67 = por %p65, %p66
      %p68 = scmp.ne.s32.totalorder %s56, %s57
      %p69 = scmp.eq.s32.totalorder %s26, 1
      %p70 = por %p68, %p69
      %p72 = scmp.ne.s32.totalorder %s57, %s71
      %p73 = scmp.eq.s32.totalorder %s26, 0
      %p74 = por %p72, %p73
      %s76 = sadd.s32 %s75, 1
      %p79 = scmp.eq.s32.totalorder %s20, 1
      %p80 = scmp.ne.s32.totalorder %s75, %s77
      %p81 = scmp.eq.s32.totalorder %s20, 0
      %p82 = por %p80, %p81
      %p83 = scmp.ne.s32.totalorder %s75, %s77
      %p84 = scmp.eq.s32.totalorder %s25, 1
      %p85 = por %p83, %p84
      %p86 = scmp.ne.s32.totalorder %s77, %s78
      %p87 = scmp.eq.s32.totalorder %s25, 0
      %p88 = por %p86, %p87
      %p89 = scmp.ne.s32.totalorder %s77, %s78
      %p90 = scmp.eq.s32.totalorder %s26, 1
      %p91 = por %p89, %p90
      %p93 = scmp.ne.s32.totalorder %s78, %s92
      %p94 = scmp.eq.s32.totalorder %s26, 0
      %p95 = por %p93, %p94
      %s97 = sadd.s32 %s96, 1
      %p100 = scmp.eq.s32.totalorder %s20, 1
      %p101 = scmp.ne.s32.totalorder %s96, %s98
      %p102 = scmp.eq.s32.totalorder %s20, 0
      %p103 = por %p101, %p102
      %p104 = scmp.ne.s32.totalorder %s96, %s98
      %p105 = scmp.eq.s32.totalorder %s25, 1
      %p106 = por %p104, %p105
      %p107 = scmp.ne.s32.totalorder %s98, %s99
      %p108 = scmp.eq.s32.totalorder %s25, 0
      %p109 = por %p107, %p108
      %p110 = scmp.ne.s32.totalorder %s98, %s99
      %p111 = scmp.eq.s32.totalorder %s26, 1
      %p112 = por %p110, %p111
      %p114 = scmp.ne.s32.totalorder %s99, %s113
      %p115 = scmp.eq.s32.totalorder %s26, 0
      %p116 = por %p114, %p115
      %s118 = sadd.s32 %s117, 1
      %p121 = scmp.eq.s32.totalorder %s20, 1
      %p122 = scmp.ne.s32.totalorder %s117, %s119
      %p123 = scmp.eq.s32.totalorder %s20, 0
      %p124 = por %p122, %p123
      %p125 = scmp.ne.s32.totalorder %s117, %s119
      %p126 = scmp.eq.s32.totalorder %s25, 1
      %p127 = por %p125, %p126
      %p128 = scmp.ne.s32.totalorder %s119, %s120
      %p129 = scmp.eq.s32.totalorder %s25, 0
      %p130 = por %p128, %p129
      %p131 = scmp.ne.s32.totalorder %s119, %s120
      %p132 = scmp.eq.s32.totalorder %s26, 1
      %p133 = por %p131, %p132
      %p135 = scmp.ne.s32.totalorder %s120, %s134
      %p136 = scmp.eq.s32.totalorder %s26, 0
      %p137 = por %p135, %p136
      %s139 = sadd.s32 %s138, 1
      %p142 = scmp.eq.s32.totalorder %s20, 1
      %p143 = scmp.ne.s32.totalorder %s138, %s140
      %p144 = scmp.eq.s32.totalorder %s20, 0
      %p145 = por %p143, %p144
      %p146 = scmp.ne.s32.totalorder %s138, %s140
      %p147 = scmp.eq.s32.totalorder %s25, 1
      %p148 = por %p146, %p147
      %p149 = scmp.ne.s32.totalorder %s140, %s141
      %p150 = scmp.eq.s32.totalorder %s25, 0
      %p151 = por %p149, %p150
      %p152 = scmp.ne.s32.totalorder %s140, %s141
      %p153 = scmp.eq.s32.totalorder %s26, 1
      %p154 = por %p152, %p153
      %p156 = scmp.ne.s32.totalorder %s141, %s155
      %p157 = scmp.eq.s32.totalorder %s26, 0
      %p158 = por %p156, %p157
      %s160 = sadd.s32 %s159, 1
      %p163 = scmp.eq.s32.totalorder %s20, 1
      %p164 = scmp.ne.s32.totalorder %s159, %s161
      %p165 = scmp.eq.s32.totalorder %s20, 0
      %p166 = por %p164, %p165
      %p167 = scmp.ne.s32.totalorder %s159, %s161
      %p168 = scmp.eq.s32.totalorder %s25, 1
      %p169 = por %p167, %p168
      %p170 = scmp.ne.s32.totalorder %s161, %s162
      %p171 = scmp.eq.s32.totalorder %s25, 0
      %p172 = por %p170, %p171
      %p173 = scmp.ne.s32.totalorder %s161, %s162
      %p174 = scmp.eq.s32.totalorder %s26, 1
      %p175 = por %p173, %p174
      %p177 = scmp.ne.s32.totalorder %s162, %s176
      %p178 = scmp.eq.s32.totalorder %s26, 0
      %p179 = por %p177, %p178
      %s181 = sadd.s32 %s180, 1
      %p184 = scmp.eq.s32.totalorder %s20, 1
      %p185 = scmp.ne.s32.totalorder %s180, %s182
      %p186 = scmp.eq.s32.totalorder %s20, 0
      %p187 = por %p185, %p186
      %p188 = scmp.ne.s32.totalorder %s180, %s182
      %p189 = scmp.eq.s32.totalorder %s25, 1
      %p190 = por %p188, %p189
      %p191 = scmp.ne.s32.totalorder %s182, %s183
      %p192 = scmp.eq.s32.totalorder %s25, 0
      %p193 = por %p191, %p192
      %p194 = scmp.ne.s32.totalorder %s182, %s183
      %p195 = scmp.eq.s32.totalorder %s26, 1
      %p196 = por %p194, %p195
      %p198 = scmp.ne.s32.totalorder %s183, %s197
      %p199 = scmp.eq.s32.totalorder %s26, 0
      %p200 = por %p198, %p199
      %s202 = sadd.s32 %s201, 1
      %p205 = scmp.eq.s32.totalorder %s20, 1
      %p206 = scmp.ne.s32.totalorder %s201, %s203
      %p207 = scmp.eq.s32.totalorder %s20, 0
      %p208 = por %p206, %p207
      %p209 = scmp.ne.s32.totalorder %s201, %s203
      %p210 = scmp.eq.s32.totalorder %s25, 1
      %p211 = por %p209, %p210
      %p212 = scmp.ne.s32.totalorder %s203, %s204
      %p213 = scmp.eq.s32.totalorder %s25, 0
      %p214 = por %p212, %p213
      %p215 = scmp.ne.s32.totalorder %s203, %s204
      %p216 = scmp.eq.s32.totalorder %s26, 1
      %p217 = por %p215, %p216
      %p219 = scmp.ne.s32.totalorder %s204, %s218
      %p220 = scmp.eq.s32.totalorder %s26, 0
      %p221 = por %p219, %p220
      %s222 = ssub.s32 %s20, %s27
      %p223 = scmp.eq.s32.totalorder %s222, 0
      %s225 = sadd.s32 %s224, 1
      %s226 = scalar_select %p223, %s224, %s225
      %p229 = pneg %p223
      %p230 = scmp.eq.s32.totalorder %s20, 1
      %p231 = por %p229, %p230
      %p232 = scmp.ne.s32.totalorder %s224, %s227
      %p233 = scmp.eq.s32.totalorder %s20, 0
      %p234 = por %p232, %p233
      %p235 = scmp.ne.s32.totalorder %s224, %s227
      %p236 = scmp.eq.s32.totalorder %s25, 1
      %p237 = por %p235, %p236
      %p238 = scmp.ne.s32.totalorder %s227, %s228
      %p239 = scmp.eq.s32.totalorder %s25, 0
      %p240 = por %p238, %p239
      %p241 = scmp.ne.s32.totalorder %s227, %s228
      %p242 = scmp.eq.s32.totalorder %s26, 1
      %p243 = por %p241, %p242
      %p245 = scmp.ne.s32.totalorder %s228, %s244
      %p246 = scmp.eq.s32.totalorder %s26, 0
      %p247 = por %p245, %p246
      %p248 = scmp.le.s32.totalorder 1, %s20
      %p249 = scmp.lt.s32.totalorder %s20, 3
      %p250 = pnand %p248, %p249
      %p251 = pneg %p250
      // Predicated region
      $region9: #{tpu_custom_call.1} parent=5 // pred_check
        _
      $region10: #{tpu_custom_call.1} parent=5 // pred_check_branch
        %253 = sbr.rel (%p250) target = $region12
      $region11: #{tpu_custom_call.1} parent=5 // pred_region
        %s254 = ssub.s32 %s20, 1
        // Predicated region
        $region13: #{tpu_custom_call.1} parent=11 // pred_check
          %p255 = pneg %p67
        $region14: #{tpu_custom_call.1} parent=11 // pred_check_branch
          %257 = sbr.rel (%p255) target = $region16
        $region15: #{tpu_custom_call.1} parent=11 // pred_region
          _
        $region16: #{tpu_custom_call.1} parent=11 // pred_fallthru
          _
        // Predicated region
        $region17: #{tpu_custom_call.1} parent=11 // pred_check
          %p258 = pneg %p88
        $region18: #{tpu_custom_call.1} parent=11 // pred_check_branch
          %260 = sbr.rel (%p258) target = $region20
        $region19: #{tpu_custom_call.1} parent=11 // pred_region
          _
        $region20: #{tpu_custom_call.1} parent=11 // pred_fallthru
          _
        // Predicated region
        $region21: #{tpu_custom_call.1} parent=11 // pred_check
          %p261 = pneg %p109
        $region22: #{tpu_custom_call.1} parent=11 // pred_check_branch
          %263 = sbr.rel (%p261) target = $region24
        $region23: #{tpu_custom_call.1} parent=11 // pred_region
          _
        $region24: #{tpu_custom_call.1} parent=11 // pred_fallthru
          _
        // Predicated region
        $region25: #{tpu_custom_call.1} parent=11 // pred_check
          %p264 = pneg %p130
        $region26: #{tpu_custom_call.1} parent=11 // pred_check_branch
          %266 = sbr.rel (%p264) target = $region28
        $region27: #{tpu_custom_call.1} parent=11 // pred_region
          _
        $region28: #{tpu_custom_call.1} parent=11 // pred_fallthru
          _
        // Predicated region
        $region29: #{tpu_custom_call.1} parent=11 // pred_check
          %p267 = pneg %p151
        $region30: #{tpu_custom_call.1} parent=11 // pred_check_branch
          %269 = sbr.rel (%p267) target = $region32
        $region31: #{tpu_custom_call.1} parent=11 // pred_region
          _
        $region32: #{tpu_custom_call.1} parent=11 // pred_fallthru
          _
        // Predicated region
        $region33: #{tpu_custom_call.1} parent=11 // pred_check
          %p270 = pneg %p172
        $region34: #{tpu_custom_call.1} parent=11 // pred_check_branch
          %272 = sbr.rel (%p270) target = $region36
        $region35: #{tpu_custom_call.1} parent=11 // pred_region
          _
        $region36: #{tpu_custom_call.1} parent=11 // pred_fallthru
          _
        // Predicated region
        $region37: #{tpu_custom_call.1} parent=11 // pred_check
          %p273 = pneg %p193
        $region38: #{tpu_custom_call.1} parent=11 // pred_check_branch
          %275 = sbr.rel (%p273) target = $region40
        $region39: #{tpu_custom_call.1} parent=11 // pred_region
          _
        $region40: #{tpu_custom_call.1} parent=11 // pred_fallthru
          _
        // Predicated region
        $region41: #{tpu_custom_call.1} parent=11 // pred_check
          %p276 = pneg %p214
        $region42: #{tpu_custom_call.1} parent=11 // pred_check_branch
          %278 = sbr.rel (%p276) target = $region44
        $region43: #{tpu_custom_call.1} parent=11 // pred_region
          _
        $region44: #{tpu_custom_call.1} parent=11 // pred_fallthru
          _
      $region12: #{tpu_custom_call.1} parent=5 // pred_fallthru
        _
      %p279 = scmp.lt.s32.totalorder %s20, 2
      // Predicated region
      $region45: #{tpu_custom_call.1} parent=5 // pred_check
        %p280 = pneg %p279
      $region46: #{tpu_custom_call.1} parent=5 // pred_check_branch
        %282 = sbr.rel (%p280) target = $region48
      $region47: #{tpu_custom_call.1} parent=5 // pred_region
        // Predicated region
        $region49: #{tpu_custom_call.1} parent=47 // pred_check
          %p283 = pneg %p40
        $region50: #{tpu_custom_call.1} parent=47 // pred_check_branch
          %285 = sbr.rel (%p283) target = $region52
        $region51: #{tpu_custom_call.1} parent=47 // pred_region
          %s286 = smul.u32 19, %s20
          %p287 = scmp.lt.s32.totalorder %s286, 37
          %s288 = scalar_select %p287, %s286, 37
          %s289 = smul.addr %s288, 8
          %s290 = scalar_lea.vmem %s0, %s289
          %s291 = smul.u32 19, %s20
        $region52: #{tpu_custom_call.1} parent=47 // pred_fallthru
          _
      $region48: #{tpu_custom_call.1} parent=5 // pred_fallthru
        _
      %p292 = scmp.le.s32.totalorder 1, %s20
      %p293 = scmp.lt.s32.totalorder %s20, 3
      %p294 = pnand %p292, %p293
      %p295 = pneg %p294
      // Predicated region
      $region53: #{tpu_custom_call.1} parent=5 // pred_check
        _
      $region54: #{tpu_custom_call.1} parent=5 // pred_check_branch
        %297 = sbr.rel (%p294) target = $region56
      $region55: #{tpu_custom_call.1} parent=5 // pred_region
        %s298 = ssub.s32 %s20, 1
        %s299 = smul.u32 19, %s25
        %p300 = scmp.lt.s32.totalorder %s299, 37
        %s301 = scalar_select %p300, %s299, 37
        %s302 = smul.addr %s301, 8
        %s303 = scalar_lea.vmem %s0, %s302
        %p304 = pneg %p46
        %p305 = pneg %p43
        %p306 = pneg %p67
        %p307 = pneg %p64
        %p308 = pneg %p88
        %p309 = pneg %p85
        %p310 = pneg %p109
        %p311 = pneg %p106
        %p312 = pneg %p130
        %p313 = pneg %p127
        %p314 = pneg %p151
        %p315 = pneg %p148
        %p316 = pneg %p172
        %p317 = pneg %p169
        %p318 = pneg %p193
        %p319 = pneg %p190
        %p320 = pneg %p214
        %p321 = pneg %p211
        %p322 = pneg %p240
        %p323 = pneg %p237
        %s324 = sand.u32 %s227, 1
        %s325 = scalar_lea.sflag [#allocation4], %s324
        %s326 = sand.u32 %s227, 1
        %s327 = smul.addr %s326, 2
        %s328 = scalar_lea.vmem [#allocation3], %s327
        %s329 = smul.u32 19, %s25
        %p330 = scmp.lt.s32.totalorder %s329, 37
        %s331 = scalar_select %p330, %s329, 37
        %s332 = smul.addr %s331, 8
        %s333 = scalar_lea.vmem %s0, %s332
        %s334 = smul.u32 19, %s25
        %v336 = vld [vmem:[%s333] sm:$0xff]
        %v337 = vld [vmem:[%s333 + $0x8] sm:$0xff]
        %v338 = vld [vmem:[%s333 + $0x10] sm:$0xff]
        %v339 = vld [vmem:[%s333 + $0x18] sm:$0xff]
        %v340 = vld [vmem:[%s333 + $0x20] sm:$0xff]
        %v341 = vld [vmem:[%s333 + $0x28] sm:$0xff]
        %v342 = vld [vmem:[%s333 + $0x30] sm:$0xff]
        %v343 = vld [vmem:[%s333 + $0x38] sm:$0xff]
        %v344 = vld [vmem:[%s333 + $0x40] sm:$0xff]
        %v345 = vld [vmem:[%s333 + $0x48] sm:$0xff]
        %v346 = vld [vmem:[%s333 + $0x50] sm:$0xff]
        %v347 = vld [vmem:[%s333 + $0x58] sm:$0xff]
        %v348 = vld [vmem:[%s333 + $0x60] sm:$0xff]
        %v349 = vld [vmem:[%s333 + $0x68] sm:$0xff]
        %v350 = vld [vmem:[%s333 + $0x70] sm:$0xff]
        %v351 = vld [vmem:[%s333 + $0x78] sm:$0xff]
        %v352 = vld [vmem:[%s333 + $0x80] sm:$0xff]
        %v353 = vld [vmem:[%s333 + $0x88] sm:$0xff]
        %v354 = vld [vmem:[%s333 + $0x90] sm:$0xff]
        %v355 = vpack.c.bf16 %v337, %v336
        %v356 = vpack.c.bf16 %v339, %v338
        %v357 = vpack.c.bf16 %v341, %v340
        %v358 = vpack.c.bf16 %v343, %v342
        %v359 = vpack.c.bf16 %v345, %v344
        %v360 = vpack.c.bf16 %v347, %v346
        %v361 = vpack.c.bf16 %v349, %v348
        %v362 = vpack.c.bf16 %v351, %v350
        %v363 = vpack.c.bf16 %v353, %v352
        %v364 = vpack.c.bf16 %v354, %v354
        %v365 = vld [vmem:[%s1] sm:$0xff]
        %v366 = vld [vmem:[%s1 + $0x8] sm:$0xff]
        %v367 = vld [vmem:[%s1 + $0x10] sm:$0x33]
        %v368 = vld [vmem:[%s2] sm:$0x3]
        %v370 = vlaneseq
        %v371 = vshrl.u32 %v370, 7
        %v372 = vsub.s32 0, %v371
        %v373 = vrot.slane %v368, %v372
        %v374 = vlaneseq
        %v375 = vshrl.u32 %v374, 7
        %v376 = vsub.s32 1, %v375
        %v377 = vrot.slane %v368, %v376
        %v383 = vunpack.c.l.b16 %v365
        %v384 = vunpack.c.h.b16 %v365
        %v385 = vunpack.c.l.b16 %v366
        %v386 = vunpack.c.h.b16 %v366
        %v387 = vunpack.c.l.b16 %v367
        %v388 = vunpack.c.h.b16 %v367
        %v389 = vpack.c.b16 %v385, %v383
        %v390 = vpack.c.b16 %v386, %v384
        %v391 = vpack.c.b16 %v387, %v387
        %v392 = vpack.c.b16 %v388, %v388
        %vm395 = vcmask 162816
        %v397 = vsel %vm395, %v355, 0
        %v400 = vsel %vm395, %v356, 0
        %v403 = vsel %vm395, %v357, 0
        %v406 = vsel %vm395, %v358, 0
        %v409 = vsel %vm395, %v359, 0
        %v412 = vsel %vm395, %v360, 0
        %v415 = vsel %vm395, %v361, 0
        %v418 = vsel %vm395, %v362, 0
        %v421 = vsel %vm395, %v363, 0
        %v424 = vsel %vm395, %v364, 0
        %vm426 = vcmask 1041408
        %v428 = vsel %vm426, %v391, 0
        %v431 = vsel %vm426, %v392, 0
        %433 = vmatprep.subr.bf16.mxu0 %v390
        %434 = vmatpush1.bf16.msra.mxu0 %v389
        %435 = vmatprep.subr.bf16.mxu0 %v431
        %436 = vmatpush1.bf16.msra.mxu0 %v428
        %437 = vmatprep.subr.bf16.mxu0 0
        %438 = vmatpush1.bf16.msra.mxu0 0
        %439 = vmatprep.subr.bf16.mxu0 0
        %440 = vmatpush1.bf16.msra.mxu0 0
        %441 = vmatprep.subr.bf16.mxu0 0
        %442 = vmatpush1.bf16.msra.mxu0 0
        %443 = vmatprep.subr.bf16.mxu0 0
        %444 = vmatpush1.bf16.msra.mxu0 0
        %445 = vmatprep.subr.bf16.mxu0 0
        %446 = vmatpush1.bf16.msra.mxu0 0
        %447 = vmatprep.subr.bf16.mxu0 0
        %448 = vmatpush1.bf16.msra.mxu0 0
        %449 = vmatprep.subr.bf16.mxu0 0
        %450 = vmatpush1.bf16.msra.mxu0 0
        %451 = vmatprep.subr.bf16.mxu0 0
        %452 = vmatpush1.bf16.msra.mxu0 0
        %453 = vmatprep.subr.bf16.mxu0 0
        %454 = vmatpush1.bf16.msra.mxu0 0
        %455 = vmatprep.subr.bf16.mxu0 0
        %456 = vmatpush1.bf16.msra.mxu0 0
        %457 = vmatprep.subr.bf16.mxu0 0
        %458 = vmatpush1.bf16.msra.mxu0 0
        %459 = vmatprep.subr.bf16.mxu0 0
        %460 = vmatpush1.bf16.msra.mxu0 0
        %461 = vmatprep.subr.bf16.mxu0 0
        %462 = vmatpush1.bf16.msra.mxu0 0
        %463 = vmatprep.subr.bf16.mxu0 0
        %464 = vmatpush1.bf16.msra.mxu0 0
        %465 = vmatprep.mubr.bf16.mxu0 0
        %466 = vmatmul.mubr.bf16.gmra.mrb[0].mxu0 %v397
        %v467 = vpop.f32.mrb[0].mxu0
        %v468 = vadd.f32 %v373, %v467
        %v469 = vpop.f32.mrb[0].mxu0
        %v470 = vadd.f32 %v377, %v469
        %v471 = vpop.f32.mrb[0].mxu0
        %v472 = vadd.f32 %v373, %v471
        %v473 = vpop.f32.mrb[0].mxu0
        %v474 = vadd.f32 %v377, %v473
        %475 = vmatprep.mubr.bf16.mxu0 0
        %476 = vmatmul.mubr.bf16.gmra.mrb[0].mxu0 %v400
        %v477 = vpop.f32.mrb[0].mxu0
        %v478 = vadd.f32 %v373, %v477
        %v479 = vpop.f32.mrb[0].mxu0
        %v480 = vadd.f32 %v377, %v479
        %v481 = vpop.f32.mrb[0].mxu0
        %v482 = vadd.f32 %v373, %v481
        %v483 = vpop.f32.mrb[0].mxu0
        %v484 = vadd.f32 %v377, %v483
        %485 = vmatprep.mubr.bf16.mxu0 0
        %486 = vmatmul.mubr.bf16.gmra.mrb[0].mxu0 %v403
        %v487 = vpop.f32.mrb[0].mxu0
        %v488 = vadd.f32 %v373, %v487
        %v489 = vpop.f32.mrb[0].mxu0
        %v490 = vadd.f32 %v377, %v489
        %v491 = vpop.f32.mrb[0].mxu0
        %v492 = vadd.f32 %v373, %v491
        %v493 = vpop.f32.mrb[0].mxu0
        %v494 = vadd.f32 %v377, %v493
        %495 = vmatprep.mubr.bf16.mxu0 0
        %496 = vmatmul.mubr.bf16.gmra.mrb[0].mxu0 %v406
        %v497 = vpop.f32.mrb[0].mxu0
        %v498 = vadd.f32 %v373, %v497
        %v499 = vpop.f32.mrb[0].mxu0
        %v500 = vadd.f32 %v377, %v499
        %v501 = vpop.f32.mrb[0].mxu0
        %v502 = vadd.f32 %v373, %v501
        %v503 = vpop.f32.mrb[0].mxu0
        %v504 = vadd.f32 %v377, %v503
        %505 = vmatprep.mubr.bf16.mxu0 0
        %506 = vmatmul.mubr.bf16.gmra.mrb[0].mxu0 %v409
        %v507 = vpop.f32.mrb[0].mxu0
        %v508 = vadd.f32 %v373, %v507
        %v509 = vpop.f32.mrb[0].mxu0
        %v510 = vadd.f32 %v377, %v509
        %v511 = vpop.f32.mrb[0].mxu0
        %v512 = vadd.f32 %v373, %v511
        %v513 = vpop.f32.mrb[0].mxu0
        %v514 = vadd.f32 %v377, %v513
        %515 = vmatprep.mubr.bf16.mxu0 0
        %516 = vmatmul.mubr.bf16.gmra.mrb[0].mxu0 %v412
        %v517 = vpop.f32.mrb[0].mxu0
        %v518 = vadd.f32 %v373, %v517
        %v519 = vpop.f32.mrb[0].mxu0
        %v520 = vadd.f32 %v377, %v519
        %v521 = vpop.f32.mrb[0].mxu0
        %v522 = vadd.f32 %v373, %v521
        %v523 = vpop.f32.mrb[0].mxu0
        %v524 = vadd.f32 %v377, %v523
        %525 = vmatprep.mubr.bf16.mxu0 0
        %526 = vmatmul.mubr.bf16.gmra.mrb[0].mxu0 %v415
        %v527 = vpop.f32.mrb[0].mxu0
        %v528 = vadd.f32 %v373, %v527
        %v529 = vpop.f32.mrb[0].mxu0
        %v530 = vadd.f32 %v377, %v529
        %v531 = vpop.f32.mrb[0].mxu0
        %v532 = vadd.f32 %v373, %v531
        %v533 = vpop.f32.mrb[0].mxu0
        %v534 = vadd.f32 %v377, %v533
        %535 = vmatprep.mubr.bf16.mxu0 0
        %536 = vmatmul.mubr.bf16.gmra.mrb[0].mxu0 %v418
        %v537 = vpop.f32.mrb[0].mxu0
        %v538 = vadd.f32 %v373, %v537
        %v539 = vpop.f32.mrb[0].mxu0
        %v540 = vadd.f32 %v377, %v539
        %v541 = vpop.f32.mrb[0].mxu0
        %v542 = vadd.f32 %v373, %v541
        %v543 = vpop.f32.mrb[0].mxu0
        %v544 = vadd.f32 %v377, %v543
        %545 = vmatprep.mubr.bf16.mxu0 0
        %546 = vmatmul.mubr.bf16.gmra.mrb[0].mxu0 %v421
        %v547 = vpop.f32.mrb[0].mxu0
        %v548 = vadd.f32 %v373, %v547
        %v549 = vpop.f32.mrb[0].mxu0
        %v550 = vadd.f32 %v377, %v549
        %v551 = vpop.f32.mrb[0].mxu0
        %v552 = vadd.f32 %v373, %v551
        %v553 = vpop.f32.mrb[0].mxu0
        %v554 = vadd.f32 %v377, %v553
        %555 = vmatprep.mubr.bf16.mxu0 0
        %556 = vmatmul.mubr.bf16.gmra.mrb[0].mxu0 %v424
        %v557 = vpop.f32.mrb[0].mxu0
        %v558 = vadd.f32 %v373, %v557
        %v559 = vpop.f32.mrb[0].mxu0
        %v560 = vadd.f32 %v377, %v559
        %v561 = vpop.f32.mrb[0].mxu0
        %v562 = vpop.f32.mrb[0].mxu0
        %563 = vdwg.mxu0
        %v564 = vmax.f32 %v468, 0.0
        %v565 = vmax.f32 %v470, 0.0
        %v566 = vmax.f32 %v472, 0.0
        %v567 = vmax.f32 %v474, 0.0
        %v568 = vmax.f32 %v478, 0.0
        %v569 = vmax.f32 %v480, 0.0
        %v570 = vmax.f32 %v482, 0.0
        %v571 = vmax.f32 %v484, 0.0
        %v572 = vmax.f32 %v488, 0.0
        %v573 = vmax.f32 %v490, 0.0
        %v574 = vmax.f32 %v492, 0.0
        %v575 = vmax.f32 %v494, 0.0
        %v576 = vmax.f32 %v498, 0.0
        %v577 = vmax.f32 %v500, 0.0
        %v578 = vmax.f32 %v502, 0.0
        %v579 = vmax.f32 %v504, 0.0
        %v580 = vmax.f32 %v508, 0.0
        %v581 = vmax.f32 %v510, 0.0
        %v582 = vmax.f32 %v512, 0.0
        %v583 = vmax.f32 %v514, 0.0
        %v584 = vmax.f32 %v518, 0.0
        %v585 = vmax.f32 %v520, 0.0
        %v586 = vmax.f32 %v522, 0.0
        %v587 = vmax.f32 %v524, 0.0
        %v588 = vmax.f32 %v528, 0.0
        %v589 = vmax.f32 %v530, 0.0
        %v590 = vmax.f32 %v532, 0.0
        %v591 = vmax.f32 %v534, 0.0
        %v592 = vmax.f32 %v538, 0.0
        %v593 = vmax.f32 %v540, 0.0
        %v594 = vmax.f32 %v542, 0.0
        %v595 = vmax.f32 %v544, 0.0
        %v596 = vmax.f32 %v548, 0.0
        %v597 = vmax.f32 %v550, 0.0
        %v598 = vmax.f32 %v552, 0.0
        %v599 = vmax.f32 %v554, 0.0
        %v600 = vmax.f32 %v558, 0.0
        %v601 = vmax.f32 %v560, 0.0
        %v602 = vpack.c.bf16 %v566, %v564
        %v603 = vpack.c.bf16 %v567, %v565
        %v604 = vpack.c.bf16 %v570, %v568
        %v605 = vpack.c.bf16 %v571, %v569
        %v606 = vpack.c.bf16 %v574, %v572
        %v607 = vpack.c.bf16 %v575, %v573
        %v608 = vpack.c.bf16 %v578, %v576
        %v609 = vpack.c.bf16 %v579, %v577
        %v610 = vpack.c.bf16 %v582, %v580
        %v611 = vpack.c.bf16 %v583, %v581
        %v612 = vpack.c.bf16 %v586, %v584
        %v613 = vpack.c.bf16 %v587, %v585
        %v614 = vpack.c.bf16 %v590, %v588
        %v615 = vpack.c.bf16 %v591, %v589
        %v616 = vpack.c.bf16 %v594, %v592
        %v617 = vpack.c.bf16 %v595, %v593
        %v618 = vpack.c.bf16 %v598, %v596
        %v619 = vpack.c.bf16 %v599, %v597
        %v620 = vpack.c.bf16 %v600, %v600
        %v621 = vpack.c.bf16 %v601, %v601
        %v622 = vld [vmem:[%s3] sm:$0xf]
        %v623 = vld [vmem:[%s3 + $0x4] sm:$0xf]
        %v624 = vld [vmem:[%s3 + $0x8] sm:$0xf]
        %v625 = vld [vmem:[%s3 + $0xc] sm:$0xf]
        %v626 = vld [vmem:[%s3 + $0x10] sm:$0xf]
        %v627 = vld [vmem:[%s3 + $0x14] sm:$0xf]
        %v628 = vld [vmem:[%s3 + $0x18] sm:$0xf]
        %v629 = vld [vmem:[%s3 + $0x1c] sm:$0xf]
        %v630 = vld [vmem:[%s3 + $0x20] sm:$0xf]
        %v631 = vld [vmem:[%s3 + $0x24] sm:$0xf]
        %v632 = vld [vmem:[%s3 + $0x28] sm:$0xf]
        %v633 = vld [vmem:[%s3 + $0x2c] sm:$0xf]
        %v634 = vld [vmem:[%s3 + $0x30] sm:$0xf]
        %v635 = vld [vmem:[%s3 + $0x34] sm:$0xf]
        %v636 = vld [vmem:[%s3 + $0x38] sm:$0xf]
        %v637 = vld [vmem:[%s3 + $0x3c] sm:$0xf]
        %v638 = vld [vmem:[%s3 + $0x40] sm:$0xf]
        %v639 = vld [vmem:[%s3 + $0x44] sm:$0xf]
        %v640 = vld [vmem:[%s3 + $0x48] sm:$0xf]
        %v641 = vld [vmem:[%s3 + $0x4c] sm:$0xf]
        %v642 = vld [vmem:[%s3 + $0x50] sm:$0xf]
        %v643 = vld [vmem:[%s3 + $0x54] sm:$0xf]
        %v644 = vld [vmem:[%s3 + $0x58] sm:$0xf]
        %v645 = vld [vmem:[%s3 + $0x5c] sm:$0xf]
        %v646 = vld [vmem:[%s3 + $0x60] sm:$0xf]
        %v647 = vld [vmem:[%s3 + $0x64] sm:$0xf]
        %v648 = vld [vmem:[%s3 + $0x68] sm:$0xf]
        %v649 = vld [vmem:[%s3 + $0x6c] sm:$0xf]
        %v650 = vld [vmem:[%s3 + $0x70] sm:$0xf]
        %v651 = vld [vmem:[%s3 + $0x74] sm:$0xf]
        %v652 = vld [vmem:[%s3 + $0x78] sm:$0xf]
        %v653 = vld [vmem:[%s3 + $0x7c] sm:$0xf]
        %v654 = vld [vmem:[%s4] sm:$0x1]
        %v656 = vlaneseq
        %v657 = vshrl.u32 %v656, 7
        %v658 = vsub.s32 0, %v657
        %v659 = vrot.slane %v654, %v658
        %v693 = vunpack.c.l.b16 %v622
        %v694 = vunpack.c.l.b16 %v623
        %v695 = vunpack.c.l.b16 %v624
        %v696 = vunpack.c.l.b16 %v625
        %v697 = vunpack.c.l.b16 %v626
        %v698 = vunpack.c.l.b16 %v627
        %v699 = vunpack.c.l.b16 %v628
        %v700 = vunpack.c.l.b16 %v629
        %v701 = vunpack.c.l.b16 %v630
        %v702 = vunpack.c.l.b16 %v631
        %v703 = vunpack.c.l.b16 %v632
        %v704 = vunpack.c.l.b16 %v633
        %v705 = vunpack.c.l.b16 %v634
        %v706 = vunpack.c.l.b16 %v635
        %v707 = vunpack.c.l.b16 %v636
        %v708 = vunpack.c.l.b16 %v637
        %v709 = vunpack.c.l.b16 %v638
        %v710 = vunpack.c.l.b16 %v639
        %v711 = vunpack.c.l.b16 %v640
        %v712 = vunpack.c.l.b16 %v641
        %v713 = vunpack.c.l.b16 %v642
        %v714 = vunpack.c.l.b16 %v643
        %v715 = vunpack.c.l.b16 %v644
        %v716 = vunpack.c.l.b16 %v645
        %v717 = vunpack.c.l.b16 %v646
        %v718 = vunpack.c.l.b16 %v647
        %v719 = vunpack.c.l.b16 %v648
        %v720 = vunpack.c.l.b16 %v649
        %v721 = vunpack.c.l.b16 %v650
        %v722 = vunpack.c.l.b16 %v651
        %v723 = vunpack.c.l.b16 %v652
        %v724 = vunpack.c.l.b16 %v653
        %v725 = vpack.c.b16 %v694, %v693
        %v726 = vpack.c.b16 %v696, %v695
        %v727 = vpack.c.b16 %v698, %v697
        %v728 = vpack.c.b16 %v700, %v699
        %v729 = vpack.c.b16 %v702, %v701
        %v730 = vpack.c.b16 %v704, %v703
        %v731 = vpack.c.b16 %v706, %v705
        %v732 = vpack.c.b16 %v708, %v707
        %v733 = vpack.c.b16 %v710, %v709
        %v734 = vpack.c.b16 %v712, %v711
        %v735 = vpack.c.b16 %v714, %v713
        %v736 = vpack.c.b16 %v716, %v715
        %v737 = vpack.c.b16 %v718, %v717
        %v738 = vpack.c.b16 %v720, %v719
        %v739 = vpack.c.b16 %v722, %v721
        %v740 = vpack.c.b16 %v724, %v723
        %757 = vmatprep.subr.bf16.mxu0 0
        %758 = vmatpush1.bf16.msra.mxu0 %v725
        %759 = vmatprep.subr.bf16.mxu0 0
        %760 = vmatpush1.bf16.msra.mxu0 %v726
        %761 = vmatprep.subr.bf16.mxu0 0
        %762 = vmatpush1.bf16.msra.mxu0 %v727
        %763 = vmatprep.subr.bf16.mxu0 0
        %764 = vmatpush1.bf16.msra.mxu0 %v728
        %765 = vmatprep.subr.bf16.mxu0 0
        %766 = vmatpush1.bf16.msra.mxu0 %v729
        %767 = vmatprep.subr.bf16.mxu0 0
        %768 = vmatpush1.bf16.msra.mxu0 %v730
        %769 = vmatprep.subr.bf16.mxu0 0
        %770 = vmatpush1.bf16.msra.mxu0 %v731
        %771 = vmatprep.subr.bf16.mxu0 0
        %772 = vmatpush1.bf16.msra.mxu0 %v732
        %773 = vmatprep.subr.bf16.mxu0 0
        %774 = vmatpush1.bf16.msra.mxu0 %v733
        %775 = vmatprep.subr.bf16.mxu0 0
        %776 = vmatpush1.bf16.msra.mxu0 %v734
        %777 = vmatprep.subr.bf16.mxu0 0
        %778 = vmatpush1.bf16.msra.mxu0 %v735
        %779 = vmatprep.subr.bf16.mxu0 0
        %780 = vmatpush1.bf16.msra.mxu0 %v736
        %781 = vmatprep.subr.bf16.mxu0 0
        %782 = vmatpush1.bf16.msra.mxu0 %v737
        %783 = vmatprep.subr.bf16.mxu0 0
        %784 = vmatpush1.bf16.msra.mxu0 %v738
        %785 = vmatprep.subr.bf16.mxu0 0
        %786 = vmatpush1.bf16.msra.mxu0 %v739
        %787 = vmatprep.subr.bf16.mxu0 0
        %788 = vmatpush1.bf16.msra.mxu0 %v740
        %789 = vmatprep.mubr.bf16.mxu0 %v603
        %790 = vmatmul.mubr.bf16.gmra.mrb[0].mxu0 %v602
        %v791 = vpop.f32.mrb[0].mxu0
        %v792 = vadd.f32 %v659, %v791
        %v793 = vpop.f32.mrb[0].mxu0
        %v794 = vpop.f32.mrb[0].mxu0
        %v795 = vadd.f32 %v659, %v794
        %v796 = vpop.f32.mrb[0].mxu0
        %797 = vmatprep.mubr.bf16.mxu0 %v605
        %798 = vmatmul.mubr.bf16.gmra.mrb[0].mxu0 %v604
        %v799 = vpop.f32.mrb[0].mxu0
        %v800 = vadd.f32 %v659, %v799
        %v801 = vpop.f32.mrb[0].mxu0
        %v802 = vpop.f32.mrb[0].mxu0
        %v803 = vadd.f32 %v659, %v802
        %v804 = vpop.f32.mrb[0].mxu0
        %805 = vmatprep.mubr.bf16.mxu0 %v607
        %806 = vmatmul.mubr.bf16.gmra.mrb[0].mxu0 %v606
        %v807 = vpop.f32.mrb[0].mxu0
        %v808 = vadd.f32 %v659, %v807
        %v809 = vpop.f32.mrb[0].mxu0
        %v810 = vpop.f32.mrb[0].mxu0
        %v811 = vadd.f32 %v659, %v810
        %v812 = vpop.f32.mrb[0].mxu0
        %813 = vmatprep.mubr.bf16.mxu0 %v609
        %814 = vmatmul.mubr.bf16.gmra.mrb[0].mxu0 %v608
        %v815 = vpop.f32.mrb[0].mxu0
        %v816 = vadd.f32 %v659, %v815
        %v817 = vpop.f32.mrb[0].mxu0
        %v818 = vpop.f32.mrb[0].mxu0
        %v819 = vadd.f32 %v659, %v818
        %v820 = vpop.f32.mrb[0].mxu0
        %821 = vmatprep.mubr.bf16.mxu0 %v611
        %822 = vmatmul.mubr.bf16.gmra.mrb[0].mxu0 %v610
        %v823 = vpop.f32.mrb[0].mxu0
        %v824 = vadd.f32 %v659, %v823
        %v825 = vpop.f32.mrb[0].mxu0
        %v826 = vpop.f32.mrb[0].mxu0
        %v827 = vadd.f32 %v659, %v826
        %v828 = vpop.f32.mrb[0].mxu0
        %829 = vmatprep.mubr.bf16.mxu0 %v613
        %830 = vmatmul.mubr.bf16.gmra.mrb[0].mxu0 %v612
        %v831 = vpop.f32.mrb[0].mxu0
        %v832 = vadd.f32 %v659, %v831
        %v833 = vpop.f32.mrb[0].mxu0
        %v834 = vpop.f32.mrb[0].mxu0
        %v835 = vadd.f32 %v659, %v834
        %v836 = vpop.f32.mrb[0].mxu0
        %837 = vmatprep.mubr.bf16.mxu0 %v615
        %838 = vmatmul.mubr.bf16.gmra.mrb[0].mxu0 %v614
        %v839 = vpop.f32.mrb[0].mxu0
        %v840 = vadd.f32 %v659, %v839
        %v841 = vpop.f32.mrb[0].mxu0
        %v842 = vpop.f32.mrb[0].mxu0
        %v843 = vadd.f32 %v659, %v842
        %v844 = vpop.f32.mrb[0].mxu0
        %845 = vmatprep.mubr.bf16.mxu0 %v617
        %846 = vmatmul.mubr.bf16.gmra.mrb[0].mxu0 %v616
        %v847 = vpop.f32.mrb[0].mxu0
        %v848 = vadd.f32 %v659, %v847
        %v849 = vpop.f32.mrb[0].mxu0
        %v850 = vpop.f32.mrb[0].mxu0
        %v851 = vadd.f32 %v659, %v850
        %v852 = vpop.f32.mrb[0].mxu0
        %853 = vmatprep.mubr.bf16.mxu0 %v619
        %854 = vmatmul.mubr.bf16.gmra.mrb[0].mxu0 %v618
        %v855 = vpop.f32.mrb[0].mxu0
        %v856 = vadd.f32 %v659, %v855
        %v857 = vpop.f32.mrb[0].mxu0
        %v858 = vpop.f32.mrb[0].mxu0
        %v859 = vadd.f32 %v659, %v858
        %v860 = vpop.f32.mrb[0].mxu0
        %861 = vmatprep.mubr.bf16.mxu0 %v621
        %862 = vmatmul.mubr.bf16.gmra.mrb[0].mxu0 %v620
        %v863 = vpop.f32.mrb[0].mxu0
        %v864 = vadd.f32 %v659, %v863
        %v865 = vpop.f32.mrb[0].mxu0
        %v866 = vpop.f32.mrb[0].mxu0
        %v867 = vpop.f32.mrb[0].mxu0
        %868 = vdwg.mxu0
        %v869 = vmax.f32 %v792, 0.0
        %v870 = vmax.f32 %v795, 0.0
        %v871 = vmax.f32 %v800, 0.0
        %v872 = vmax.f32 %v803, 0.0
        %v873 = vmax.f32 %v808, 0.0
        %v874 = vmax.f32 %v811, 0.0
        %v875 = vmax.f32 %v816, 0.0
        %v876 = vmax.f32 %v819, 0.0
        %v877 = vmax.f32 %v824, 0.0
        %v878 = vmax.f32 %v827, 0.0
        %v879 = vmax.f32 %v832, 0.0
        %v880 = vmax.f32 %v835, 0.0
        %v881 = vmax.f32 %v840, 0.0
        %v882 = vmax.f32 %v843, 0.0
        %v883 = vmax.f32 %v848, 0.0
        %v884 = vmax.f32 %v851, 0.0
        %v885 = vmax.f32 %v856, 0.0
        %v886 = vmax.f32 %v859, 0.0
        %v887 = vmax.f32 %v864, 0.0
        %v888 = vpack.c.bf16 %v870, %v869
        %v889 = vpack.c.bf16 %v872, %v871
        %v890 = vpack.c.bf16 %v874, %v873
        %v891 = vpack.c.bf16 %v876, %v875
        %v892 = vpack.c.bf16 %v878, %v877
        %v893 = vpack.c.bf16 %v880, %v879
        %v894 = vpack.c.bf16 %v882, %v881
        %v895 = vpack.c.bf16 %v884, %v883
        %v896 = vpack.c.bf16 %v886, %v885
        %v897 = vpack.c.bf16 %v887, %v887
        %v898 = vld [vmem:[%s5] sm:$0xf]
        %v899 = vld [vmem:[%s5 + $0x4] sm:$0xf]
        %v900 = vld [vmem:[%s5 + $0x8] sm:$0xf]
        %v901 = vld [vmem:[%s5 + $0xc] sm:$0xf]
        %v902 = vld [vmem:[%s5 + $0x10] sm:$0xf]
        %v903 = vld [vmem:[%s5 + $0x14] sm:$0xf]
        %v904 = vld [vmem:[%s5 + $0x18] sm:$0xf]
        %v905 = vld [vmem:[%s5 + $0x1c] sm:$0xf]
        %v906 = vld [vmem:[%s5 + $0x20] sm:$0xf]
        %v907 = vld [vmem:[%s5 + $0x24] sm:$0xf]
        %v908 = vld [vmem:[%s5 + $0x28] sm:$0xf]
        %v909 = vld [vmem:[%s5 + $0x2c] sm:$0xf]
        %v910 = vld [vmem:[%s5 + $0x30] sm:$0xf]
        %v911 = vld [vmem:[%s5 + $0x34] sm:$0xf]
        %v912 = vld [vmem:[%s5 + $0x38] sm:$0xf]
        %v913 = vld [vmem:[%s5 + $0x3c] sm:$0xf]
        %v914 = vld [vmem:[%s6] sm:$0x1]
        %v916 = vlaneseq
        %v917 = vshrl.u32 %v916, 7
        %v918 = vsub.s32 0, %v917
        %v919 = vrot.slane %v914, %v918
        %v937 = vunpack.c.l.b16 %v898
        %v938 = vunpack.c.l.b16 %v899
        %v939 = vunpack.c.l.b16 %v900
        %v940 = vunpack.c.l.b16 %v901
        %v941 = vunpack.c.l.b16 %v902
        %v942 = vunpack.c.l.b16 %v903
        %v943 = vunpack.c.l.b16 %v904
        %v944 = vunpack.c.l.b16 %v905
        %v945 = vunpack.c.l.b16 %v906
        %v946 = vunpack.c.l.b16 %v907
        %v947 = vunpack.c.l.b16 %v908
        %v948 = vunpack.c.l.b16 %v909
        %v949 = vunpack.c.l.b16 %v910
        %v950 = vunpack.c.l.b16 %v911
        %v951 = vunpack.c.l.b16 %v912
        %v952 = vunpack.c.l.b16 %v913
        %v953 = vpack.c.b16 %v938, %v937
        %v954 = vpack.c.b16 %v940, %v939
        %v955 = vpack.c.b16 %v942, %v941
        %v956 = vpack.c.b16 %v944, %v943
        %v957 = vpack.c.b16 %v946, %v945
        %v958 = vpack.c.b16 %v948, %v947
        %v959 = vpack.c.b16 %v950, %v949
        %v960 = vpack.c.b16 %v952, %v951
        %969 = vmatprep.subr.bf16.mxu0 0
        %970 = vmatpush1.bf16.msra.mxu0 %v953
        %971 = vmatprep.subr.bf16.mxu0 0
        %972 = vmatpush1.bf16.msra.mxu0 %v954
        %973 = vmatprep.subr.bf16.mxu0 0
        %974 = vmatpush1.bf16.msra.mxu0 %v955
        %975 = vmatprep.subr.bf16.mxu0 0
        %976 = vmatpush1.bf16.msra.mxu0 %v956
        %977 = vmatprep.subr.bf16.mxu0 0
        %978 = vmatpush1.bf16.msra.mxu0 %v957
        %979 = vmatprep.subr.bf16.mxu0 0
        %980 = vmatpush1.bf16.msra.mxu0 %v958
        %981 = vmatprep.subr.bf16.mxu0 0
        %982 = vmatpush1.bf16.msra.mxu0 %v959
        %983 = vmatprep.subr.bf16.mxu0 0
        %984 = vmatpush1.bf16.msra.mxu0 %v960
        %985 = vmatprep.subr.bf16.mxu0 0
        %986 = vmatpush1.bf16.msra.mxu0 0
        %987 = vmatprep.subr.bf16.mxu0 0
        %988 = vmatpush1.bf16.msra.mxu0 0
        %989 = vmatprep.subr.bf16.mxu0 0
        %990 = vmatpush1.bf16.msra.mxu0 0
        %991 = vmatprep.subr.bf16.mxu0 0
        %992 = vmatpush1.bf16.msra.mxu0 0
        %993 = vmatprep.subr.bf16.mxu0 0
        %994 = vmatpush1.bf16.msra.mxu0 0
        %995 = vmatprep.subr.bf16.mxu0 0
        %996 = vmatpush1.bf16.msra.mxu0 0
        %997 = vmatprep.subr.bf16.mxu0 0
        %998 = vmatpush1.bf16.msra.mxu0 0
        %999 = vmatprep.subr.bf16.mxu0 0
        %1000 = vmatpush1.bf16.msra.mxu0 0
        %1001 = vmatprep.mubr.bf16.mxu0 0
        %1002 = vmatmul.mubr.bf16.gmra.mrb[0].mxu0 %v888
        %v1003 = vpop.f32.mrb[0].mxu0
        %v1004 = vadd.f32 %v919, %v1003
        %v1005 = vpop.f32.mrb[0].mxu0
        %v1006 = vpop.f32.mrb[0].mxu0
        %v1007 = vadd.f32 %v919, %v1006
        %v1008 = vpop.f32.mrb[0].mxu0
        %1009 = vmatprep.mubr.bf16.mxu0 0
        %1010 = vmatmul.mubr.bf16.gmra.mrb[0].mxu0 %v889
        %v1011 = vpop.f32.mrb[0].mxu0
        %v1012 = vadd.f32 %v919, %v1011
        %v1013 = vpop.f32.mrb[0].mxu0
        %v1014 = vpop.f32.mrb[0].mxu0
        %v1015 = vadd.f32 %v919, %v1014
        %v1016 = vpop.f32.mrb[0].mxu0
        %1017 = vmatprep.mubr.bf16.mxu0 0
        %1018 = vmatmul.mubr.bf16.gmra.mrb[0].mxu0 %v890
        %v1019 = vpop.f32.mrb[0].mxu0
        %v1020 = vadd.f32 %v919, %v1019
        %v1021 = vpop.f32.mrb[0].mxu0
        %v1022 = vpop.f32.mrb[0].mxu0
        %v1023 = vadd.f32 %v919, %v1022
        %v1024 = vpop.f32.mrb[0].mxu0
        %1025 = vmatprep.mubr.bf16.mxu0 0
        %1026 = vmatmul.mubr.bf16.gmra.mrb[0].mxu0 %v891
        %v1027 = vpop.f32.mrb[0].mxu0
        %v1028 = vadd.f32 %v919, %v1027
        %v1029 = vpop.f32.mrb[0].mxu0
        %v1030 = vpop.f32.mrb[0].mxu0
        %v1031 = vadd.f32 %v919, %v1030
        %v1032 = vpop.f32.mrb[0].mxu0
        %1033 = vmatprep.mubr.bf16.mxu0 0
        %1034 = vmatmul.mubr.bf16.gmra.mrb[0].mxu0 %v892
        %v1035 = vpop.f32.mrb[0].mxu0
        %v1036 = vadd.f32 %v919, %v1035
        %v1037 = vpop.f32.mrb[0].mxu0
        %v1038 = vpop.f32.mrb[0].mxu0
        %v1039 = vadd.f32 %v919, %v1038
        %v1040 = vpop.f32.mrb[0].mxu0
        %1041 = vmatprep.mubr.bf16.mxu0 0
        %1042 = vmatmul.mubr.bf16.gmra.mrb[0].mxu0 %v893
        %v1043 = vpop.f32.mrb[0].mxu0
        %v1044 = vadd.f32 %v919, %v1043
        %v1045 = vpop.f32.mrb[0].mxu0
        %v1046 = vpop.f32.mrb[0].mxu0
        %v1047 = vadd.f32 %v919, %v1046
        %v1048 = vpop.f32.mrb[0].mxu0
        %1049 = vmatprep.mubr.bf16.mxu0 0
        %1050 = vmatmul.mubr.bf16.gmra.mrb[0].mxu0 %v894
        %v1051 = vpop.f32.mrb[0].mxu0
        %v1052 = vadd.f32 %v919, %v1051
        %v1053 = vpop.f32.mrb[0].mxu0
        %v1054 = vpop.f32.mrb[0].mxu0
        %v1055 = vadd.f32 %v919, %v1054
        %v1056 = vpop.f32.mrb[0].mxu0
        %1057 = vmatprep.mubr.bf16.mxu0 0
        %1058 = vmatmul.mubr.bf16.gmra.mrb[0].mxu0 %v895
        %v1059 = vpop.f32.mrb[0].mxu0
        %v1060 = vadd.f32 %v919, %v1059
        %v1061 = vpop.f32.mrb[0].mxu0
        %v1062 = vpop.f32.mrb[0].mxu0
        %v1063 = vadd.f32 %v919, %v1062
        %v1064 = vpop.f32.mrb[0].mxu0
        %1065 = vmatprep.mubr.bf16.mxu0 0
        %1066 = vmatmul.mubr.bf16.gmra.mrb[0].mxu0 %v896
        %v1067 = vpop.f32.mrb[0].mxu0
        %v1068 = vadd.f32 %v919, %v1067
        %v1069 = vpop.f32.mrb[0].mxu0
        %v1070 = vpop.f32.mrb[0].mxu0
        %v1071 = vadd.f32 %v919, %v1070
        %v1072 = vpop.f32.mrb[0].mxu0
        %1073 = vmatprep.mubr.bf16.mxu0 0
        %1074 = vmatmul.mubr.bf16.gmra.mrb[0].mxu0 %v897
        %v1075 = vpop.f32.mrb[0].mxu0
        %v1076 = vadd.f32 %v919, %v1075
        %v1077 = vpop.f32.mrb[0].mxu0
        %v1078 = vpop.f32.mrb[0].mxu0
        %v1079 = vpop.f32.mrb[0].mxu0
        %1080 = vdwg.mxu0
        %v1081 = vmax.f32 %v1004, 0.0
        %v1082 = vmax.f32 %v1007, 0.0
        %v1083 = vmax.f32 %v1012, 0.0
        %v1084 = vmax.f32 %v1015, 0.0
        %v1085 = vmax.f32 %v1020, 0.0
        %v1086 = vmax.f32 %v1023, 0.0
        %v1087 = vmax.f32 %v1028, 0.0
        %v1088 = vmax.f32 %v1031, 0.0
        %v1089 = vmax.f32 %v1036, 0.0
        %v1090 = vmax.f32 %v1039, 0.0
        %v1091 = vmax.f32 %v1044, 0.0
        %v1092 = vmax.f32 %v1047, 0.0
        %v1093 = vmax.f32 %v1052, 0.0
        %v1094 = vmax.f32 %v1055, 0.0
        %v1095 = vmax.f32 %v1060, 0.0
        %v1096 = vmax.f32 %v1063, 0.0
        %v1097 = vmax.f32 %v1068, 0.0
        %v1098 = vmax.f32 %v1071, 0.0
        %v1099 = vmax.f32 %v1076, 0.0
        %v1100 = vld [vmem:[%s7] sm:$0x1]
        %v1101 = vld [vmem:[#allocation2] sm:$0x1]
        %1103 = vset.pattern.permute.xlu0 0
        %1104 = vperm.xlu0 %1103, %v1101
        %v1105 = vpop.permute.xlu0 %1104
        %v1107 = vlaneseq
        %v1108 = vshrl.u32 %v1107, 7
        %v1109 = vsub.s32 0, %v1108
        %v1110 = vrot.slane %v1105, %v1109
        %vm1111 = vcmask 261120
        %v1113 = vsel %vm1111, %v1100, 0
        %v1116 = vsel %vm1111, %v1081, 0
        %v1119 = vsel %vm1111, %v1082, 0
        %v1122 = vsel %vm1111, %v1083, 0
        %v1125 = vsel %vm1111, %v1084, 0
        %v1128 = vsel %vm1111, %v1085, 0
        %v1131 = vsel %vm1111, %v1086, 0
        %v1134 = vsel %vm1111, %v1087, 0
        %v1137 = vsel %vm1111, %v1088, 0
        %v1140 = vsel %vm1111, %v1089, 0
        %v1143 = vsel %vm1111, %v1090, 0
        %v1146 = vsel %vm1111, %v1091, 0
        %v1149 = vsel %vm1111, %v1092, 0
        %v1152 = vsel %vm1111, %v1093, 0
        %v1155 = vsel %vm1111, %v1094, 0
        %v1158 = vsel %vm1111, %v1095, 0
        %v1161 = vsel %vm1111, %v1096, 0
        %v1164 = vsel %vm1111, %v1097, 0
        %v1167 = vsel %vm1111, %v1098, 0
        %v1170 = vsel %vm1111, %v1099, 0
        %1172 = vmatprep.subr.mxu0 0.0
        %1173 = vmatpush1.xpose.msra.mxu0 %v1116
        %1174 = vmatprep.subr.mxu0 0.0
        %1175 = vmatpush1.xpose.msra.mxu0 %v1119
        %1176 = vmatprep.subr.mxu0 0.0
        %1177 = vmatpush1.xpose.msra.mxu0 %v1122
        %1178 = vmatprep.subr.mxu0 0.0
        %1179 = vmatpush1.xpose.msra.mxu0 %v1125
        %1180 = vmatprep.subr.mxu0 0.0
        %1181 = vmatpush1.xpose.msra.mxu0 %v1128
        %1182 = vmatprep.subr.mxu0 0.0
        %1183 = vmatpush1.xpose.msra.mxu0 %v1131
        %1184 = vmatprep.subr.mxu0 0.0
        %1185 = vmatpush1.xpose.msra.mxu0 %v1134
        %1186 = vmatprep.subr.mxu0 0.0
        %1187 = vmatpush1.xpose.msra.mxu0 %v1137
        %1188 = vmatprep.subr.mxu0 0.0
        %1189 = vmatpush1.xpose.msra.mxu0 %v1140
        %1190 = vmatprep.subr.mxu0 0.0
        %1191 = vmatpush1.xpose.msra.mxu0 %v1143
        %1192 = vmatprep.subr.mxu0 0.0
        %1193 = vmatpush1.xpose.msra.mxu0 %v1146
        %1194 = vmatprep.subr.mxu0 0.0
        %1195 = vmatpush1.xpose.msra.mxu0 %v1149
        %1196 = vmatprep.subr.mxu0 0.0
        %1197 = vmatpush1.xpose.msra.mxu0 %v1152
        %1198 = vmatprep.subr.mxu0 0.0
        %1199 = vmatpush1.xpose.msra.mxu0 %v1155
        %1200 = vmatprep.subr.mxu0 0.0
        %1201 = vmatpush1.xpose.msra.mxu0 %v1158
        %1202 = vmatprep.subr.mxu0 0.0
        %1203 = vmatpush1.xpose.msra.mxu0 %v1161
        %1204 = vmatprep.subr.mxu0 0.0
        %1205 = vmatpush1.xpose.msra.mxu0 %v1164
        %1206 = vmatprep.subr.mxu0 0.0
        %1207 = vmatpush1.xpose.msra.mxu0 %v1167
        %1208 = vmatprep.subr.mxu0 0.0
        %1209 = vmatpush1.xpose.msra.mxu0 %v1170
        %1210 = vmatprep.subr.mxu0 0.0
        %1211 = vmatpush1.xpose.msra.mxu0 0.0
        %1212 = vmatprep.subr.mxu0 0.0
        %1213 = vmatpush1.xpose.msra.mxu0 0.0
        %1214 = vmatprep.subr.mxu0 0.0
        %1215 = vmatpush1.xpose.msra.mxu0 0.0
        %1216 = vmatprep.subr.mxu0 0.0
        %1217 = vmatpush1.xpose.msra.mxu0 0.0
        %1218 = vmatprep.subr.mxu0 0.0
        %1219 = vmatpush1.xpose.msra.mxu0 0.0
        %1220 = vmatprep.subr.mxu0 0.0
        %1221 = vmatpush1.xpose.msra.mxu0 0.0
        %1222 = vmatprep.subr.mxu0 0.0
        %1223 = vmatpush1.xpose.msra.mxu0 0.0
        %1224 = vmatprep.subr.mxu0 0.0
        %1225 = vmatpush1.xpose.msra.mxu0 0.0
        %1226 = vmatprep.subr.mxu0 0.0
        %1227 = vmatpush1.xpose.msra.mxu0 0.0
        %1228 = vmatprep.subr.mxu0 0.0
        %1229 = vmatpush1.xpose.msra.mxu0 0.0
        %1230 = vmatprep.subr.mxu0 0.0
        %1231 = vmatpush1.xpose.msra.mxu0 0.0
        %1232 = vmatprep.subr.mxu0 0.0
        %1233 = vmatpush1.xpose.msra.mxu0 0.0
        %1234 = vmatprep.subr.mxu0 0.0
        %1235 = vmatpush1.xpose.msra.mxu0 0.0
        %1236 = vmatprep.mubr.f32.mxu0 0.0
        %1237 = vmatmul.mubr.f32.gmra.mrb[0].mxu0 %v1113
        %v1238 = vpop.f32.mrb[0].mxu0
        %v1239 = vadd.f32 %v1110, %v1238
        %v1240 = vpop.f32.mrb[0].mxu0
        %v1241 = vadd.f32 %v1110, %v1240
        %1242 = vdwg.mxu0
        %v1243 = vmax.f32 %v1239, -30.0
        %v1244 = vmax.f32 %v1241, -30.0
        %v1245 = vmin.f32 %v1243, 30.0
        %v1246 = vmin.f32 %v1244, 30.0
        %v1247 = vsub.f32 0.0, %v1245
        %v1248 = vsub.f32 0.0, %v1246
        %v1249 = vmul.f32 %v1247, 1.442695
        %v1250 = vpow.pop %v1249
        %v1251 = vmul.f32 %v1248, 1.442695
        %v1252 = vpow.pop %v1251
        %v1253 = vadd.f32 %v1250, 1.0
        %v1254 = vadd.f32 %v1252, 1.0
        %v1255 = vrcp.pop %v1253
        %v1256 = vrcp.pop %v1254
        %v1259 = vcombine.low %v1255, %v1256
        %v1261 = vunpack.c.l.s4 1966171168
        %v1262 = vunpack.c.0.s8 %v1261
        %v1263 = vlaneseq
        %v1264 = vshrl.u32 %v1263, 7
        %v1265 = vsub.s32 %v1262, %v1264
        %v1266 = vrot.slane %v1259, %v1265
        %v1268 = vunpack.c.l.s4 1966171168
        %v1269 = vunpack.c.0.s8 %v1268
        %v1270 = vlaneseq
        %v1271 = vshrl.u32 %v1270, 7
        %v1272 = vsub.s32 %v1269, %v1271
        %v1273 = vrot.slane %v1266, %v1272
        %v1275 = vlaneseq
        %vm1276 = vcmp.ge.s32.totalorder %v1275, 0
        %vm1277 = vcmp.lt.s32.totalorder %v1275, 152
        %vm1278 = vmand %vm1276, %vm1277
        %1279 = vst.msk [vmem:[%s328] sm:$0x3] %vm1278, %v1273
        %s1280 = sand.u32 %s227, 1
        %s1281 = scalar_lea.sflag [#allocation4], %s1280
        %s1282 = sand.u32 %s227, 1
        %s1283 = smul.addr %s1282, 2
        %s1284 = scalar_lea.vmem [#allocation3], %s1283
        // Predicated region
        $region57: #{tpu_custom_call.1} parent=55 // pred_check
          %p1285 = pneg %p237
        $region58: #{tpu_custom_call.1} parent=55 // pred_check_branch
          %1287 = sbr.rel (%p1285) target = $region60
        $region59: #{tpu_custom_call.1} parent=55 // pred_region
          %s1289 = ssub.s32 32, 32
          %1290 = vsyncadd %s1281, %s1289
          %s1291 = smul.addr %s25, 2
          %s1292 = smul.addr %s1291, 16
          %s1293 = scalar_lea.hbm %s9, %s1292
          %s1295 = sshll.u32 %s1284, 4
          %s1296 = int_to_ptr.vmem [resolvable:$true] %s1295
          %1298 = dma.vmem_to_hbm [thread:$0]  %s1296, 32, %s1293, %s1281
        $region60: #{tpu_custom_call.1} parent=55 // pred_fallthru
          _
      $region56: #{tpu_custom_call.1} parent=5 // pred_fallthru
        _
      %p1299 = scmp.le.s32.totalorder 2, %s20
      // Predicated region
      $region61: #{tpu_custom_call.1} parent=5 // pred_check
        %p1300 = pneg %p1299
      $region62: #{tpu_custom_call.1} parent=5 // pred_check_branch
        %1302 = sbr.rel (%p1300) target = $region64
      $region63: #{tpu_custom_call.1} parent=5 // pred_region
        %s1303 = ssub.s32 %s20, 2
        // Predicated region
        $region65: #{tpu_custom_call.1} parent=63 // pred_check
          %p1304 = pneg %p243
        $region66: #{tpu_custom_call.1} parent=63 // pred_check_branch
          %1306 = sbr.rel (%p1304) target = $region68
        $region67: #{tpu_custom_call.1} parent=63 // pred_region
          %s1307 = sand.u32 %s228, 1
          %s1308 = scalar_lea.sflag [#allocation4], %s1307
          %s1309 = sand.u32 %s228, 1
          %s1310 = smul.addr %s1309, 2
          %s1311 = scalar_lea.vmem [#allocation3], %s1310
          %1312 = dma.done %s1308, 32
        $region68: #{tpu_custom_call.1} parent=63 // pred_fallthru
          _
      $region64: #{tpu_custom_call.1} parent=5 // pred_fallthru
        _
    $region6: #{tpu_custom_call.1} parent=1 // loop_footer
      %s24 = sadd.s32 1, %s20
    $region7: #{tpu_custom_call.1} parent=1 // loop_footer_branch
      %19 = sbr.rel target = $region3
    $region8: #{tpu_custom_call.1} parent=1 // loop_exit
      _
    %1313 = vsyncpa [#allocation4], 1
    %s1314 = scalar_lea.sflag [#allocation4], 1
    %1315 = vsyncpa %s1314, 1

</llo_original>
